<compile_context>
chip_gen: v7x
topology: tpu7x:2x2x1
jax: 0.10.0
libtpu: 0.0.40
codegen_flags: <defaults>
</compile_context>

<pallas_src>
import jax
import jax.numpy as jnp
from jax.experimental import pallas as pl
from jax.experimental.pallas import tpu as pltpu


def _round_up(a, b):
    return ((a + b - 1) // b) * b


def _pa_kernel(x_ref, w1_ref, b1_ref, w2c_ref, b2_ref, o_ref):
    # x_ref:   (1, C, T)  pixel tile, channels on sublanes, pixels on lanes
    # w1_ref:  (C, C)     conv1 weight [out, in]
    # b1_ref:  (C, 1)     conv1 bias (column, broadcasts over pixels)
    # w2c_ref: (C, 1)     conv2 weight as a column
    # b2_ref:  (1,)       conv2 bias, SMEM scalar
    x = x_ref[0].astype(jnp.float32)                       # (C, T)

    # first 1x1 conv (C -> C) + ReLU   --- MXU, big dim (T) on the N axis
    h = jnp.dot(w1_ref[...], x, preferred_element_type=jnp.float32) + b1_ref[...]
    h = jnp.maximum(h, 0.0)                                # (C, T)

    # second 1x1 conv (C -> 1) + sigmoid --- VPU multiply + sublane reduce
    y = jnp.sum(h * w2c_ref[...], axis=0, keepdims=True) + b2_ref[0]   # (1, T)
    y = jax.nn.sigmoid(y)

    # pixel attention: broadcast multiply over channels (sublanes)
    o_ref[0] = (x * y).astype(o_ref.dtype)


def pa_layer(x_nchw, w1, b1, w2, b2, *, target_tile_hw=4096):
    """PALayer forward.

    x_nchw: (N, C, H, W)
    w1: (C, C)  -- conv1 weight squeezed from (C, C, 1, 1), [out, in]
    b1: (C,)
    w2: (1, C)  -- conv2 weight squeezed from (1, C, 1, 1), [out, in]
    b2: (1,)
    """
    N, C, H, W = x_nchw.shape
    HW = H * W

    # Free reshape: channels on sublanes, pixels on lanes. No transposes.
    x = x_nchw.reshape(N, C, HW)

    # Tile sizing: lane-dense (multiple of 128), capped at target_tile_hw.
    if HW <= target_tile_hw:
        tile_hw = _round_up(HW, 128)
    else:
        tile_hw = target_tile_hw                      # already a multiple of 128
    hw_pad = _round_up(HW, tile_hw)
    if hw_pad != HW:
        x = jnp.pad(x, ((0, 0), (0, 0), (0, hw_pad - HW)))

    # Pre-arrange parameters.
    b1_col = b1.reshape(C, 1).astype(jnp.float32)
    w2_col = w2.reshape(C, 1).astype(jnp.float32)     # conv2 weight as column
    b2_s = b2.reshape(1).astype(jnp.float32)          # SMEM scalar

    grid = (N, hw_pad // tile_hw)

    out = pl.pallas_call(
        _pa_kernel,
        out_shape=jax.ShapeDtypeStruct((N, C, hw_pad), x_nchw.dtype),
        grid_spec=pltpu.PrefetchScalarGridSpec(
            num_scalar_prefetch=0,
            grid=grid,
            in_specs=[
                pl.BlockSpec((1, C, tile_hw), lambda n, j: (n, 0, j)),   # x tile
                pl.BlockSpec((C, C), lambda n, j: (0, 0)),               # w1 (full)
                pl.BlockSpec((C, 1), lambda n, j: (0, 0)),               # b1
                pl.BlockSpec((C, 1), lambda n, j: (0, 0)),               # w2 column
                pl.BlockSpec(memory_space=pltpu.MemorySpace.SMEM),       # b2 scalar
            ],
            out_specs=pl.BlockSpec((1, C, tile_hw), lambda n, j: (n, 0, j)),
        ),
        compiler_params=pltpu.CompilerParams(
            dimension_semantics=("parallel", "parallel"),
        ),
    )(x, w1, b1_col, w2_col, b2_s)

    # Drop the pixel padding (no-op when hw_pad == HW) and restore NCHW.
    return out[:, :, :HW].reshape(N, C, H, W)


def pa_layer_ref(x, w1, b1, w2, b2):
    """Pure-JAX reference mirroring the PyTorch module."""
    h = jnp.einsum("nchw,oc->nohw", x, w1) + b1[None, :, None, None]
    h = jnp.maximum(h, 0.0)
    y = jnp.einsum("nchw,oc->nohw", h, w2) + b2[None, :, None, None]
    y = jax.nn.sigmoid(y)
    return x * y


if __name__ == "__main__":
    key = jax.random.PRNGKey(0)
    N, C, H, W = 2, 4, 16, 16

    kx, k1, kb1, k2, kb2 = jax.random.split(key, 5)
    x = jax.random.normal(kx, (N, C, H, W), dtype=jnp.float32)

    # Deterministic synthetic parameters (shapes match nn.Conv2d 1x1 kernels).
    w1 = jax.random.normal(k1, (C, C), dtype=jnp.float32) * 0.5     # conv1 weight (C,C,1,1)
    b1 = jax.random.normal(kb1, (C,), dtype=jnp.float32) * 0.1      # conv1 bias
    w2 = jax.random.normal(k2, (1, C), dtype=jnp.float32) * 0.5     # conv2 weight (1,C,1,1)
    b2 = jax.random.normal(kb2, (1,), dtype=jnp.float32) * 0.1      # conv2 bias

    out = pa_layer(x, w1, b1, w2, b2)
    out = jax.block_until_ready(out)

    ref = pa_layer_ref(x, w1, b1, w2, b2)
    assert out.shape == (N, C, H, W)
    assert jnp.allclose(out, ref, atol=1e-5, rtol=1e-5), "mismatch vs reference"

    print("KERNEL_OK")
</pallas_src>

<mosaic_0001>
module attributes {stable_mosaic.version = 11 : i64} {
  func.func @_pa_kernel(%arg0: i32, %arg1: i32, %arg2: memref<1x4x256xf32, #tpu.memory_space<vmem>>, %arg3: memref<4x4xf32, #tpu.memory_space<vmem>>, %arg4: memref<4x1xf32, #tpu.memory_space<vmem>>, %arg5: memref<4x1xf32, #tpu.memory_space<vmem>>, %arg6: memref<1xf32, #tpu.memory_space<smem>>, %arg7: memref<1x4x256xf32, #tpu.memory_space<vmem>>) attributes {dimension_semantics = [#tpu.dimension_semantics<parallel>, #tpu.dimension_semantics<parallel>], iteration_bounds = array<i64: 2, 1>, scalar_prefetch = 0 : i64, scratch_operands = 0 : i64, tpu.core_type = #tpu.core_type<tc>, window_params = [{transform_indices = @transform_0, window_bounds = array<i64: 1, 4, 256>}, {pipeline_mode = #tpu.pipeline_mode<synchronous>, transform_indices = @transform_1, window_bounds = array<i64: 4, 4>}, {pipeline_mode = #tpu.pipeline_mode<synchronous>, transform_indices = @transform_2, window_bounds = array<i64: 4, 1>}, {pipeline_mode = #tpu.pipeline_mode<synchronous>, transform_indices = @transform_3, window_bounds = array<i64: 4, 1>}, {transform_indices = @transform_4, window_bounds = array<i64: 1>}, {transform_indices = @transform_5, window_bounds = array<i64: 1, 4, 256>}]} {
    %c0 = arith.constant 0 : index
    %c0_0 = arith.constant 0 : index
    %c0_1 = arith.constant 0 : index
    %0 = vector.load %arg2[%c0, %c0_0, %c0_1] : memref<1x4x256xf32, #tpu.memory_space<vmem>>, vector<1x4x256xf32>
    %1 = vector.shape_cast %0 : vector<1x4x256xf32> to vector<4x256xf32>
    %c0_2 = arith.constant 0 : index
    %c0_3 = arith.constant 0 : index
    %2 = vector.load %arg3[%c0_2, %c0_3] : memref<4x4xf32, #tpu.memory_space<vmem>>, vector<4x4xf32>
    %cst = arith.constant dense<0.000000e+00> : vector<4x256xf32>
    %3 = tpu.matmul %2, %1, %cst {dimension_numbers = #tpu.dot_dimension_numbers<[1], [0], [0], [1], [0, 0, 1, 1], [], []>} : vector<4x4xf32>, vector<4x256xf32>, vector<4x256xf32> -> vector<4x256xf32>
    %c0_4 = arith.constant 0 : index
    %c0_5 = arith.constant 0 : index
    %4 = vector.load %arg4[%c0_4, %c0_5] : memref<4x1xf32, #tpu.memory_space<vmem>>, vector<4x1xf32>
    %5 = vector.broadcast %4 : vector<4x1xf32> to vector<4x256xf32>
    %6 = arith.addf %3, %5 : vector<4x256xf32>
    %cst_6 = arith.constant 0.000000e+00 : f32
    %7 = vector.broadcast %cst_6 : f32 to vector<4x256xf32>
    %8 = arith.maximumf %6, %7 : vector<4x256xf32>
    %c0_7 = arith.constant 0 : index
    %c0_8 = arith.constant 0 : index
    %9 = vector.load %arg5[%c0_7, %c0_8] : memref<4x1xf32, #tpu.memory_space<vmem>>, vector<4x1xf32>
    %10 = vector.broadcast %9 : vector<4x1xf32> to vector<4x256xf32>
    %11 = arith.mulf %8, %10 : vector<4x256xf32>
    %cst_9 = arith.constant dense<0.000000e+00> : vector<256xf32>
    %12 = vector.multi_reduction <add>, %11, %cst_9 [0] : vector<4x256xf32> to vector<256xf32>
    %13 = vector.shape_cast %12 : vector<256xf32> to vector<1x256xf32>
    %c0_10 = arith.constant 0 : index
    %14 = memref.load %arg6[%c0_10] : memref<1xf32, #tpu.memory_space<smem>>
    %15 = vector.broadcast %14 : f32 to vector<1x256xf32>
    %16 = arith.addf %13, %15 : vector<1x256xf32>
    %17 = arith.negf %16 : vector<1x256xf32>
    %18 = math.exp %17 : vector<1x256xf32>
    %cst_11 = arith.constant 1.000000e+00 : f32
    %19 = vector.broadcast %cst_11 : f32 to vector<1x256xf32>
    %20 = arith.addf %19, %18 : vector<1x256xf32>
    %21 = arith.divf %19, %20 : vector<1x256xf32>
    %22 = vector.broadcast %21 : vector<1x256xf32> to vector<4x256xf32>
    %23 = arith.mulf %1, %22 : vector<4x256xf32>
    %c0_12 = arith.constant 0 : index
    %c0_13 = arith.constant 0 : index
    %c0_14 = arith.constant 0 : index
    %24 = vector.load %arg7[%c0_12, %c0_13, %c0_14] : memref<1x4x256xf32, #tpu.memory_space<vmem>>, vector<1x4x256xf32>
    %25 = vector.shape_cast %24 : vector<1x4x256xf32> to vector<4x256xf32>
    %26 = vector.shape_cast %23 : vector<4x256xf32> to vector<1x4x256xf32>
    tpu.vector_store %arg7[%c0_12, %c0_13, %c0_14], %26 {strides = array<i32>} : memref<1x4x256xf32, #tpu.memory_space<vmem>>, vector<1x4x256xf32>,
    return
  }
  func.func @transform_0(%arg0: i32, %arg1: i32) -> (i32, i32, i32) {
    %c0_i32 = arith.constant 0 : i32
    %c0_i32_0 = arith.constant 0 : i32
    return %arg0, %c0_i32, %arg1 : i32, i32, i32
  }
  func.func @transform_1(%arg0: i32, %arg1: i32) -> (i32, i32) {
    %c0_i32 = arith.constant 0 : i32
    %c0_i32_0 = arith.constant 0 : i32
    %c0_i32_1 = arith.constant 0 : i32
    return %c0_i32, %c0_i32_0 : i32, i32
  }
  func.func @transform_2(%arg0: i32, %arg1: i32) -> (i32, i32) {
    %c0_i32 = arith.constant 0 : i32
    %c0_i32_0 = arith.constant 0 : i32
    %c0_i32_1 = arith.constant 0 : i32
    return %c0_i32, %c0_i32_0 : i32, i32
  }
  func.func @transform_3(%arg0: i32, %arg1: i32) -> (i32, i32) {
    %c0_i32 = arith.constant 0 : i32
    %c0_i32_0 = arith.constant 0 : i32
    %c0_i32_1 = arith.constant 0 : i32
    return %c0_i32, %c0_i32_0 : i32, i32
  }
  func.func @transform_4(%arg0: i32, %arg1: i32) -> i32 {
    %c0_i32 = arith.constant 0 : i32
    %c0_i32_0 = arith.constant 0 : i32
    return %c0_i32 : i32
  }
  func.func @transform_5(%arg0: i32, %arg1: i32) -> (i32, i32, i32) {
    %c0_i32 = arith.constant 0 : i32
    %c0_i32_0 = arith.constant 0 : i32
    return %arg0, %c0_i32, %arg1 : i32, i32, i32
  }
}

</mosaic_0001>

<llo_original>
// kernel: tpu_custom_call.1
$region0: #{tpu_custom_call.1}
  #allocation0 [shape = 'u32[]', space=smem, size = 0x4, offset = 0x4, fixed_abs, tag = 'smem constant byte address 0x4 - core index']
  #allocation1 [shape = 'u32[144,128]{1,0:T(1,128)}', space=vmem, size = 0x12000, scoped, tag = 'internal scratch']
  #allocation2 [shape = 'f32[1]{0:T(128)S(6)}', space=smem, size = 0x200, scoped, tag = 'scoped memory for tpu_custom_call.1']
  %s0 = inlined_call_operand.hbm [shape: f32[2,4,256], index: 0, kind: input, shape index: {}]
  %s1 = inlined_call_operand.vmem [shape: f32[4,4], index: 1, kind: input, shape index: {}]
  %s2 = inlined_call_operand.vmem [shape: f32[4,1], index: 2, kind: input, shape index: {}]
  %s3 = inlined_call_operand.vmem [shape: f32[4,1], index: 3, kind: input, shape index: {}]
  %s4 = inlined_call_operand.<no memory space> [shape: f32[1], index: 4, kind: input, shape index: {}]
  %s5 = inlined_call_operand.hbm [shape: f32[2,4,256], index: 5, kind: output, shape index: {}]
  %s6 = sld [smem:[#allocation0]]
  $region57: #{tpu_custom_call.1} parent=0
    _
  %s8 = ssub.s32 1, %s6
  %s9 = scalar_select 0, %s8, %s6
  %10 = sst [smem:[#allocation2]] %s4
  $region1: #{tpu_custom_call.1} parent=0
    #allocation3 [shape = 'u8[8192]{0}', space=vmem, size = 0x2000, scoped, tag = 'input window, operand 0']
    #allocation4 [shape = 's32[2]{0}', space=sflag, size = 0x8, scoped, tag = 'scoped memory for tpu_custom_call.1']
    #allocation5 [shape = 's32[2]{0}', space=sflag, size = 0x8, scoped, tag = 'scoped memory for tpu_custom_call.1']
    #allocation6 [shape = 'u8[8192]{0}', space=vmem, size = 0x2000, scoped, tag = 'output window, operand 0']
    %11 = vsyncpa [#allocation4], 0
    %s12 = scalar_lea.sflag [#allocation4], 1
    %13 = vsyncpa %s12, 0
    %14 = vsyncpa [#allocation5], 0
    %s15 = scalar_lea.sflag [#allocation5], 1
    %16 = vsyncpa %s15, 0
    loop: start=0, step=1, limit=4
    $region2: #{tpu_custom_call.1} parent=1 // loop_pre_header
      _
    $region3: #{tpu_custom_call.1} parent=1 // loop_header
      %s18 = sphi 0, %s22
      %p19 = scmp.ge.s32.totalorder %s18, 4
      %s25 = sphi 0, %s37
      %s26 = sphi 0, %s33
      %s27 = sphi 0, %s25
      %s28 = sphi 0, %s26
      %s29 = sphi 0, %s27
      %s30 = sphi 0, %s28
      %s42 = sphi 0, %s44
      %s45 = sphi 0, %s42
      %s46 = sphi 0, %s45
      %s62 = sphi 0, %s46
      %s66 = sphi 0, %s66
      %s68 = sphi 0, %s66
      %s69 = sphi 0, %s68
      %s83 = sphi 0, %s69
      %s87 = sphi 0, %s87
      %s89 = sphi 0, %s87
      %s90 = sphi 0, %s89
      %s104 = sphi 0, %s90
      %s108 = sphi 0, %s108
      %s110 = sphi 0, %s108
      %s111 = sphi 0, %s110
      %s125 = sphi 0, %s111
      %s129 = sphi 0, %s129
      %s131 = sphi 0, %s129
      %s132 = sphi 0, %s131
      %s146 = sphi 0, %s132
      %s154 = sphi 0, %s156
      %s157 = sphi 0, %s154
      %s158 = sphi 0, %s157
      %s174 = sphi 0, %s158
    $region4: #{tpu_custom_call.1} parent=1 // loop_header_branch
      %21 = sbr.rel (%p19) target = $region8
    $region5: #{tpu_custom_call.1} parent=1 // loop_body
      %s23 = ssub.s32 %s18, 1
      %s24 = ssub.s32 %s18, 2
      %s31 = sadd.s32 1, %s26
      %p32 = scmp.ge.s32.totalorder %s31, 1
      %s33 = scalar_select %p32, 0, %s31
      %s34 = sadd.s32 1, %s25
      %s35 = scalar_select %p32, %s34, %s25
      %p36 = scmp.ge.s32.totalorder %s35, 2
      %s37 = scalar_select %p36, 0, %s35
      %s38 = ssub.s32 %s25, %s37
      %s39 = ssub.s32 %s26, %s33
      %s40 = sor.u32 %s38, %s39
      %p41 = scmp.eq.s32.totalorder %s40, 0
      %s43 = sadd.s32 %s42, 1
      %s44 = scalar_select %p41, %s42, %s43
      %p47 = pneg %p41
      %p48 = scmp.eq.s32.totalorder %s18, 1
      %p49 = por %p47, %p48
      %p50 = scmp.ne.s32.totalorder %s42, %s45
      %p51 = scmp.eq.s32.totalorder %s18, 0
      %p52 = por %p50, %p51
      %p53 = scmp.ne.s32.totalorder %s42, %s45
      %p54 = scmp.eq.s32.totalorder %s23, 1
      %p55 = por %p53, %p54
      %p56 = scmp.ne.s32.totalorder %s45, %s46
      %p57 = scmp.eq.s32.totalorder %s23, 0
      %p58 = por %p56, %p57
      %p59 = scmp.ne.s32.totalorder %s45, %s46
      %p60 = scmp.eq.s32.totalorder %s24, 1
      %p61 = por %p59, %p60
      %p63 = scmp.ne.s32.totalorder %s46, %s62
      %p64 = scmp.eq.s32.totalorder %s24, 0
      %p65 = por %p63, %p64
      %s67 = sadd.s32 %s66, 1
      %p70 = scmp.eq.s32.totalorder %s18, 1
      %p71 = scmp.ne.s32.totalorder %s66, %s68
      %p72 = scmp.eq.s32.totalorder %s18, 0
      %p73 = por %p71, %p72
      %p74 = scmp.ne.s32.totalorder %s66, %s68
      %p75 = scmp.eq.s32.totalorder %s23, 1
      %p76 = por %p74, %p75
      %p77 = scmp.ne.s32.totalorder %s68, %s69
      %p78 = scmp.eq.s32.totalorder %s23, 0
      %p79 = por %p77, %p78
      %p80 = scmp.ne.s32.totalorder %s68, %s69
      %p81 = scmp.eq.s32.totalorder %s24, 1
      %p82 = por %p80, %p81
      %p84 = scmp.ne.s32.totalorder %s69, %s83
      %p85 = scmp.eq.s32.totalorder %s24, 0
      %p86 = por %p84, %p85
      %s88 = sadd.s32 %s87, 1
      %p91 = scmp.eq.s32.totalorder %s18, 1
      %p92 = scmp.ne.s32.totalorder %s87, %s89
      %p93 = scmp.eq.s32.totalorder %s18, 0
      %p94 = por %p92, %p93
      %p95 = scmp.ne.s32.totalorder %s87, %s89
      %p96 = scmp.eq.s32.totalorder %s23, 1
      %p97 = por %p95, %p96
      %p98 = scmp.ne.s32.totalorder %s89, %s90
      %p99 = scmp.eq.s32.totalorder %s23, 0
      %p100 = por %p98, %p99
      %p101 = scmp.ne.s32.totalorder %s89, %s90
      %p102 = scmp.eq.s32.totalorder %s24, 1
      %p103 = por %p101, %p102
      %p105 = scmp.ne.s32.totalorder %s90, %s104
      %p106 = scmp.eq.s32.totalorder %s24, 0
      %p107 = por %p105, %p106
      %s109 = sadd.s32 %s108, 1
      %p112 = scmp.eq.s32.totalorder %s18, 1
      %p113 = scmp.ne.s32.totalorder %s108, %s110
      %p114 = scmp.eq.s32.totalorder %s18, 0
      %p115 = por %p113, %p114
      %p116 = scmp.ne.s32.totalorder %s108, %s110
      %p117 = scmp.eq.s32.totalorder %s23, 1
      %p118 = por %p116, %p117
      %p119 = scmp.ne.s32.totalorder %s110, %s111
      %p120 = scmp.eq.s32.totalorder %s23, 0
      %p121 = por %p119, %p120
      %p122 = scmp.ne.s32.totalorder %s110, %s111
      %p123 = scmp.eq.s32.totalorder %s24, 1
      %p124 = por %p122, %p123
      %p126 = scmp.ne.s32.totalorder %s111, %s125
      %p127 = scmp.eq.s32.totalorder %s24, 0
      %p128 = por %p126, %p127
      %s130 = sadd.s32 %s129, 1
      %p133 = scmp.eq.s32.totalorder %s18, 1
      %p134 = scmp.ne.s32.totalorder %s129, %s131
      %p135 = scmp.eq.s32.totalorder %s18, 0
      %p136 = por %p134, %p135
      %p137 = scmp.ne.s32.totalorder %s129, %s131
      %p138 = scmp.eq.s32.totalorder %s23, 1
      %p139 = por %p137, %p138
      %p140 = scmp.ne.s32.totalorder %s131, %s132
      %p141 = scmp.eq.s32.totalorder %s23, 0
      %p142 = por %p140, %p141
      %p143 = scmp.ne.s32.totalorder %s131, %s132
      %p144 = scmp.eq.s32.totalorder %s24, 1
      %p145 = por %p143, %p144
      %p147 = scmp.ne.s32.totalorder %s132, %s146
      %p148 = scmp.eq.s32.totalorder %s24, 0
      %p149 = por %p147, %p148
      %s150 = ssub.s32 %s25, %s37
      %s151 = ssub.s32 %s26, %s33
      %s152 = sor.u32 %s150, %s151
      %p153 = scmp.eq.s32.totalorder %s152, 0
      %s155 = sadd.s32 %s154, 1
      %s156 = scalar_select %p153, %s154, %s155
      %p159 = pneg %p153
      %p160 = scmp.eq.s32.totalorder %s18, 1
      %p161 = por %p159, %p160
      %p162 = scmp.ne.s32.totalorder %s154, %s157
      %p163 = scmp.eq.s32.totalorder %s18, 0
      %p164 = por %p162, %p163
      %p165 = scmp.ne.s32.totalorder %s154, %s157
      %p166 = scmp.eq.s32.totalorder %s23, 1
      %p167 = por %p165, %p166
      %p168 = scmp.ne.s32.totalorder %s157, %s158
      %p169 = scmp.eq.s32.totalorder %s23, 0
      %p170 = por %p168, %p169
      %p171 = scmp.ne.s32.totalorder %s157, %s158
      %p172 = scmp.eq.s32.totalorder %s24, 1
      %p173 = por %p171, %p172
      %p175 = scmp.ne.s32.totalorder %s158, %s174
      %p176 = scmp.eq.s32.totalorder %s24, 0
      %p177 = por %p175, %p176
      %p178 = scmp.le.s32.totalorder 1, %s18
      %p179 = scmp.lt.s32.totalorder %s18, 3
      %p180 = pnand %p178, %p179
      %p181 = pneg %p180
      // Predicated region
      $region9: #{tpu_custom_call.1} parent=5 // pred_check
        _
      $region10: #{tpu_custom_call.1} parent=5 // pred_check_branch
        %183 = sbr.rel (%p180) target = $region12
      $region11: #{tpu_custom_call.1} parent=5 // pred_region
        %s184 = ssub.s32 %s18, 1
        // Predicated region
        $region13: #{tpu_custom_call.1} parent=11 // pred_check
          %p185 = pneg %p79
        $region14: #{tpu_custom_call.1} parent=11 // pred_check_branch
          %187 = sbr.rel (%p185) target = $region16
        $region15: #{tpu_custom_call.1} parent=11 // pred_region
          _
        $region16: #{tpu_custom_call.1} parent=11 // pred_fallthru
          _
        // Predicated region
        $region17: #{tpu_custom_call.1} parent=11 // pred_check
          %p188 = pneg %p100
        $region18: #{tpu_custom_call.1} parent=11 // pred_check_branch
          %190 = sbr.rel (%p188) target = $region20
        $region19: #{tpu_custom_call.1} parent=11 // pred_region
          _
        $region20: #{tpu_custom_call.1} parent=11 // pred_fallthru
          _
        // Predicated region
        $region21: #{tpu_custom_call.1} parent=11 // pred_check
          %p191 = pneg %p121
        $region22: #{tpu_custom_call.1} parent=11 // pred_check_branch
          %193 = sbr.rel (%p191) target = $region24
        $region23: #{tpu_custom_call.1} parent=11 // pred_region
          _
        $region24: #{tpu_custom_call.1} parent=11 // pred_fallthru
          _
        // Predicated region
        $region25: #{tpu_custom_call.1} parent=11 // pred_check
          %p194 = pneg %p142
        $region26: #{tpu_custom_call.1} parent=11 // pred_check_branch
          %196 = sbr.rel (%p194) target = $region28
        $region27: #{tpu_custom_call.1} parent=11 // pred_region
          _
        $region28: #{tpu_custom_call.1} parent=11 // pred_fallthru
          _
      $region12: #{tpu_custom_call.1} parent=5 // pred_fallthru
        _
      %p197 = scmp.lt.s32.totalorder %s18, 2
      // Predicated region
      $region29: #{tpu_custom_call.1} parent=5 // pred_check
        %p198 = pneg %p197
      $region30: #{tpu_custom_call.1} parent=5 // pred_check_branch
        %200 = sbr.rel (%p198) target = $region32
      $region31: #{tpu_custom_call.1} parent=5 // pred_region
        // Predicated region
        $region33: #{tpu_custom_call.1} parent=31 // pred_check
          %p201 = pneg %p52
        $region34: #{tpu_custom_call.1} parent=31 // pred_check_branch
          %203 = sbr.rel (%p201) target = $region36
        $region35: #{tpu_custom_call.1} parent=31 // pred_region
          %s204 = sand.u32 %s42, 1
          %s205 = scalar_lea.sflag [#allocation4], %s204
          %s206 = sand.u32 %s42, 1
          %s207 = smul.addr %s206, 8
          %s208 = scalar_lea.vmem [#allocation3], %s207
          %s209 = smul.u32 2, %s26
          %s211 = ssub.s32 128, 128
          %212 = vsyncadd %s205, %s211
          %s213 = smul.addr %s25, 2
          %s214 = sadd.s32 %s209, %s213
          %s215 = smul.addr %s214, 64
          %s216 = scalar_lea.hbm %s0, %s215
          %s218 = sshll.u32 %s208, 4
          %s219 = int_to_ptr.vmem [resolvable:$true] %s218
          %221 = dma.hbm_to_vmem [thread:$0]  %s216, 128, %s219, %s205
        $region36: #{tpu_custom_call.1} parent=31 // pred_fallthru
          _
      $region32: #{tpu_custom_call.1} parent=5 // pred_fallthru
        _
      %p222 = scmp.le.s32.totalorder 1, %s18
      %p223 = scmp.lt.s32.totalorder %s18, 3
      %p224 = pnand %p222, %p223
      %p225 = pneg %p224
      // Predicated region
      $region37: #{tpu_custom_call.1} parent=5 // pred_check
        _
      $region38: #{tpu_custom_call.1} parent=5 // pred_check_branch
        %227 = sbr.rel (%p224) target = $region40
      $region39: #{tpu_custom_call.1} parent=5 // pred_region
        %s228 = ssub.s32 %s18, 1
        %s229 = sand.u32 %s45, 1
        %s230 = scalar_lea.sflag [#allocation4], %s229
        %s231 = sand.u32 %s45, 1
        %s232 = smul.addr %s231, 8
        %s233 = scalar_lea.vmem [#allocation3], %s232
        // Predicated region
        $region41: #{tpu_custom_call.1} parent=39 // pred_check
          %p234 = pneg %p58
        $region42: #{tpu_custom_call.1} parent=39 // pred_check_branch
          %236 = sbr.rel (%p234) target = $region44
        $region43: #{tpu_custom_call.1} parent=39 // pred_region
          %237 = dma.done %s230, 128
        $region44: #{tpu_custom_call.1} parent=39 // pred_fallthru
          _
        %s238 = sand.u32 %s45, 1
        %s239 = scalar_lea.sflag [#allocation4], %s238
        %s240 = sand.u32 %s45, 1
        %s241 = smul.addr %s240, 8
        %s242 = scalar_lea.vmem [#allocation3], %s241
        %p243 = pneg %p58
        %p244 = pneg %p55
        %p245 = pneg %p79
        %p246 = pneg %p76
        %p247 = pneg %p100
        %p248 = pneg %p97
        %p249 = pneg %p121
        %p250 = pneg %p118
        %p251 = pneg %p142
        %p252 = pneg %p139
        %p253 = pneg %p170
        %p254 = pneg %p167
        %s255 = sand.u32 %s157, 1
        %s256 = scalar_lea.sflag [#allocation5], %s255
        %s257 = sand.u32 %s157, 1
        %s258 = smul.addr %s257, 8
        %s259 = scalar_lea.vmem [#allocation6], %s258
        %s260 = smul.u32 2, %s28
        %s261 = smul.u32 2, %s28
        %v262 = vld [vmem:[%s233] sm:$0xff]
        %v263 = vld [vmem:[%s1] sm:$0xf]
        %v264 = vld [vmem:[%s2] sm:$0xf]
        %266 = vset.pattern.permute.xlu0 0
        %267 = vperm.xlu0 %266, %v264
        %v268 = vpop.permute.xlu0 %267
        %v271 = vcombine.high %v262, %v262
        %vm272 = vcmask 31744
        %v274 = vsel %vm272, %v263, 0
        %vm276 = vcmask 1043456
        %v277 = vsel %vm276, %v262, 0
        %v279 = vsel %vm276, %v271, 0
        %281 = vmatprep.subr.mxu0 %v279
        %282 = vmatpush1.msra.mxu0 %v277
        %283 = vmatprep.subr.mxu0 0.0
        %284 = vmatpush1.msra.mxu0 0.0
        %285 = vmatprep.subr.mxu0 0.0
        %286 = vmatpush1.msra.mxu0 0.0
        %287 = vmatprep.subr.mxu0 0.0
        %288 = vmatpush1.msra.mxu0 0.0
        %289 = vmatprep.subr.mxu0 0.0
        %290 = vmatpush1.msra.mxu0 0.0
        %291 = vmatprep.subr.mxu0 0.0
        %292 = vmatpush1.msra.mxu0 0.0
        %293 = vmatprep.subr.mxu0 0.0
        %294 = vmatpush1.msra.mxu0 0.0
        %295 = vmatprep.subr.mxu0 0.0
        %296 = vmatpush1.msra.mxu0 0.0
        %297 = vmatprep.subr.mxu0 0.0
        %298 = vmatpush1.msra.mxu0 0.0
        %299 = vmatprep.subr.mxu0 0.0
        %300 = vmatpush1.msra.mxu0 0.0
        %301 = vmatprep.subr.mxu0 0.0
        %302 = vmatpush1.msra.mxu0 0.0
        %303 = vmatprep.subr.mxu0 0.0
        %304 = vmatpush1.msra.mxu0 0.0
        %305 = vmatprep.subr.mxu0 0.0
        %306 = vmatpush1.msra.mxu0 0.0
        %307 = vmatprep.subr.mxu0 0.0
        %308 = vmatpush1.msra.mxu0 0.0
        %309 = vmatprep.subr.mxu0 0.0
        %310 = vmatpush1.msra.mxu0 0.0
        %311 = vmatprep.subr.mxu0 0.0
        %312 = vmatpush1.msra.mxu0 0.0
        %313 = vmatprep.subr.mxu0 0.0
        %314 = vmatpush1.msra.mxu0 0.0
        %315 = vmatprep.subr.mxu0 0.0
        %316 = vmatpush1.msra.mxu0 0.0
        %317 = vmatprep.subr.mxu0 0.0
        %318 = vmatpush1.msra.mxu0 0.0
        %319 = vmatprep.subr.mxu0 0.0
        %320 = vmatpush1.msra.mxu0 0.0
        %321 = vmatprep.subr.mxu0 0.0
        %322 = vmatpush1.msra.mxu0 0.0
        %323 = vmatprep.subr.mxu0 0.0
        %324 = vmatpush1.msra.mxu0 0.0
        %325 = vmatprep.subr.mxu0 0.0
        %326 = vmatpush1.msra.mxu0 0.0
        %327 = vmatprep.subr.mxu0 0.0
        %328 = vmatpush1.msra.mxu0 0.0
        %329 = vmatprep.subr.mxu0 0.0
        %330 = vmatpush1.msra.mxu0 0.0
        %331 = vmatprep.subr.mxu0 0.0
        %332 = vmatpush1.msra.mxu0 0.0
        %333 = vmatprep.subr.mxu0 0.0
        %334 = vmatpush1.msra.mxu0 0.0
        %335 = vmatprep.subr.mxu0 0.0
        %336 = vmatpush1.msra.mxu0 0.0
        %337 = vmatprep.subr.mxu0 0.0
        %338 = vmatpush1.msra.mxu0 0.0
        %339 = vmatprep.subr.mxu0 0.0
        %340 = vmatpush1.msra.mxu0 0.0
        %341 = vmatprep.subr.mxu0 0.0
        %342 = vmatpush1.msra.mxu0 0.0
        %343 = vmatprep.subr.mxu0 0.0
        %344 = vmatpush1.msra.mxu0 0.0
        %345 = vmatprep.mubr.f32.mxu0 0.0
        %346 = vmatmul.mubr.f32.gmra.mrb[0].mxu0 %v274
        %v347 = vpop.f32.mrb[0].mxu0
        %v348 = vadd.f32 %v268, %v347
        %v349 = vpop.f32.mrb[0].mxu0
        %v350 = vadd.f32 %v268, %v349
        %351 = vdwg.mxu0
        %v352 = vmax.f32 %v348, 0.0
        %v353 = vmax.f32 %v350, 0.0
        %v354 = vld [vmem:[%s3] sm:$0xf]
        %356 = vset.pattern.permute.xlu0 0
        %357 = vperm.xlu0 %356, %v354
        %v358 = vpop.permute.xlu0 %357
        %v360 = vmul.f32 %v352, %v358
        %v361 = vmul.f32 %v353, %v358
        %v362 = vsel %vm276, %v360, 0.0
        %v363 = vrot.slane %v362, 4
        %v364 = vadd.f32 %v362, %v363
        %v365 = vrot.slane %v364, 2
        %v366 = vadd.f32 %v364, %v365
        %v367 = vrot.slane %v366, 1
        %v368 = vadd.f32 %v366, %v367
        %v369 = vsel %vm276, %v361, 0.0
        %v370 = vrot.slane %v369, 4
        %v371 = vadd.f32 %v369, %v370
        %v372 = vrot.slane %v371, 2
        %v373 = vadd.f32 %v371, %v372
        %v374 = vrot.slane %v373, 1
        %v375 = vadd.f32 %v373, %v374
        %s376 = sld [smem:[#allocation2]]
        %v377 = vstv %s376
        %v378 = vadd.f32 %v368, %v377
        %v379 = vadd.f32 %v375, %v377
        %v380 = vxor.u32 %v378, 2147483648
        %v381 = vxor.u32 %v379, 2147483648
        %v382 = vmul.f32 %v380, 1.442695
        %v383 = vpow.pop %v382
        %v384 = vmul.f32 %v381, 1.442695
        %v385 = vpow.pop %v384
        %v386 = vadd.f32 %v383, 1.0
        %v387 = vadd.f32 %v385, 1.0
        %v388 = vrcp.pop %v386
        %v389 = vmul.f32 1.0, %v388
        %v390 = vrcp.pop %v387
        %v391 = vmul.f32 1.0, %v390
        %v394 = vcombine.low %v389, %v391
        %v396 = vmul.f32 %v262, %v394
        %397 = vst [vmem:[%s259] sm:$0xff] %v396
        %s398 = sand.u32 %s157, 1
        %s399 = scalar_lea.sflag [#allocation5], %s398
        %s400 = sand.u32 %s157, 1
        %s401 = smul.addr %s400, 8
        %s402 = scalar_lea.vmem [#allocation6], %s401
        // Predicated region
        $region45: #{tpu_custom_call.1} parent=39 // pred_check
          %p403 = pneg %p167
        $region46: #{tpu_custom_call.1} parent=39 // pred_check_branch
          %405 = sbr.rel (%p403) target = $region48
        $region47: #{tpu_custom_call.1} parent=39 // pred_region
          %s406 = smul.u32 2, %s28
          %s408 = ssub.s32 128, 128
          %409 = vsyncadd %s399, %s408
          %s410 = smul.addr %s27, 2
          %s411 = sadd.s32 %s406, %s410
          %s412 = smul.addr %s411, 64
          %s413 = scalar_lea.hbm %s5, %s412
          %s415 = sshll.u32 %s402, 4
          %s416 = int_to_ptr.vmem [resolvable:$true] %s415
          %418 = dma.vmem_to_hbm [thread:$0]  %s416, 128, %s413, %s399
        $region48: #{tpu_custom_call.1} parent=39 // pred_fallthru
          _
      $region40: #{tpu_custom_call.1} parent=5 // pred_fallthru
        _
      %p419 = scmp.le.s32.totalorder 2, %s18
      // Predicated region
      $region49: #{tpu_custom_call.1} parent=5 // pred_check
        %p420 = pneg %p419
      $region50: #{tpu_custom_call.1} parent=5 // pred_check_branch
        %422 = sbr.rel (%p420) target = $region52
      $region51: #{tpu_custom_call.1} parent=5 // pred_region
        %s423 = ssub.s32 %s18, 2
        // Predicated region
        $region53: #{tpu_custom_call.1} parent=51 // pred_check
          %p424 = pneg %p173
        $region54: #{tpu_custom_call.1} parent=51 // pred_check_branch
          %426 = sbr.rel (%p424) target = $region56
        $region55: #{tpu_custom_call.1} parent=51 // pred_region
          %s427 = sand.u32 %s158, 1
          %s428 = scalar_lea.sflag [#allocation5], %s427
          %s429 = sand.u32 %s158, 1
          %s430 = smul.addr %s429, 8
          %s431 = scalar_lea.vmem [#allocation6], %s430
          %432 = dma.done %s428, 128
        $region56: #{tpu_custom_call.1} parent=51 // pred_fallthru
          _
      $region52: #{tpu_custom_call.1} parent=5 // pred_fallthru
        _
    $region6: #{tpu_custom_call.1} parent=1 // loop_footer
      %s22 = sadd.s32 1, %s18
    $region7: #{tpu_custom_call.1} parent=1 // loop_footer_branch
      %17 = sbr.rel target = $region3
    $region8: #{tpu_custom_call.1} parent=1 // loop_exit
      _
    %433 = vsyncpa [#allocation4], 1
    %s434 = scalar_lea.sflag [#allocation4], 1
    %435 = vsyncpa %s434, 1
    %436 = vsyncpa [#allocation5], 1
    %s437 = scalar_lea.sflag [#allocation5], 1
    %438 = vsyncpa %s437, 1

</llo_original>
